<compile_context>
chip_gen: v7x
topology: tpu7x:2x2x1
jax: 0.10.0
libtpu: 0.0.40
codegen_flags: <defaults>
</compile_context>

<pallas_src>
import functools

import jax
import jax.numpy as jnp
from jax.experimental import pallas as pl
from jax.experimental.pallas import tpu as pltpu


def _round_up(x, m):
    return (x + m - 1) // m * m


def _default_vmem_limit():
    """Chip-aware scoped-VMEM budget: ~3/4 of physical VMEM, capped at 112 MiB."""
    try:
        cap = pltpu.get_tpu_info().vmem_capacity_bytes
    except Exception:
        cap = 64 * 1024 * 1024  # conservative fallback (v7x-sized)
    return min(int(cap) * 3 // 4, 112 * 1024 * 1024)


_VMEM_LIMIT = _default_vmem_limit()


# --------------------------------------------------------------------------
# Kernel 1: LayerNorm (add already done in XLA; stats in f32, bf16 input)
# --------------------------------------------------------------------------
def layernorm_kernel(x_ref, gamma_ref, beta_ref, hid_ref, normed_ref):
    """x_ref: (TM, H) bf16; gamma/beta: (1, H) f32.

    hid_ref    : (TM, H) f32   post-norm hidden states (module output)
    normed_ref : (TM, H) bf16  same values, bf16, fed to the lm_head matmul
    """
    x = x_ref[...].astype(jnp.float32)
    mu = jnp.mean(x, axis=-1, keepdims=True)
    xc = x - mu
    var = jnp.mean(xc * xc, axis=-1, keepdims=True)
    y = xc * jax.lax.rsqrt(var + 1e-5)
    y = y * gamma_ref[...] + beta_ref[...]
    hid_ref[...] = y
    normed_ref[...] = y.astype(normed_ref.dtype)


@functools.partial(jax.jit, static_argnames=("tm",))
def _sam_layernorm(x2_bf16, gamma, beta, *, tm):
    Mp, H = x2_bf16.shape
    grid = (Mp // tm,)

    cost = pl.CostEstimate(
        flops=8 * Mp * H,
        transcendentals=Mp,  # one rsqrt per row
        bytes_accessed=Mp * H * (2 + 4 + 2) + 2 * H * 4,
    )

    return pl.pallas_call(
        layernorm_kernel,
        out_shape=(
            jax.ShapeDtypeStruct((Mp, H), jnp.float32),
            jax.ShapeDtypeStruct((Mp, H), jnp.bfloat16),
        ),
        grid_spec=pltpu.PrefetchScalarGridSpec(
            num_scalar_prefetch=0,
            grid=grid,
            in_specs=[
                pl.BlockSpec((tm, H), lambda i: (i, 0)),  # bf16 activations
                pl.BlockSpec((1, H), lambda i: (0, 0)),   # LayerNorm gamma
                pl.BlockSpec((1, H), lambda i: (0, 0)),   # LayerNorm beta
            ],
            out_specs=[
                pl.BlockSpec((tm, H), lambda i: (i, 0)),  # hidden (f32)
                pl.BlockSpec((tm, H), lambda i: (i, 0)),  # normed (bf16)
            ],
        ),
        compiler_params=pltpu.CompilerParams(
            dimension_semantics=("parallel",),
            vmem_limit_bytes=_VMEM_LIMIT,
        ),
        cost_estimate=cost,
    )(x2_bf16, gamma, beta)


# --------------------------------------------------------------------------
# Kernel 2: lm_head matmul (tied, pre-transposed weight)
# --------------------------------------------------------------------------
def lm_head_kernel(normed_ref, w_ref, logits_ref):
    """normed_ref: (TM, H) bf16; w_ref: (H, TN) bf16; logits_ref: (TM, TN) f32."""
    logits_ref[...] = jnp.dot(
        normed_ref[...], w_ref[...], preferred_element_type=jnp.float32
    )


@functools.partial(jax.jit, static_argnames=("tm", "tn"))
def _sam_lm_head(normed_bf16, w_t_bf16, *, tm, tn):
    Mp, H = normed_bf16.shape
    _, Vp = w_t_bf16.shape
    grid = (Mp // tm, Vp // tn)

    cost = pl.CostEstimate(
        flops=2 * Mp * H * Vp,
        transcendentals=0,
        bytes_accessed=(Mp * H * 2            # normed in (once per M tile)
                        + grid[0] * Vp * H * 2  # weight streamed per M tile
                        + Mp * Vp * 4),         # logits out
    )

    return pl.pallas_call(
        lm_head_kernel,
        out_shape=jax.ShapeDtypeStruct((Mp, Vp), jnp.float32),
        grid_spec=pltpu.PrefetchScalarGridSpec(
            num_scalar_prefetch=0,
            grid=grid,
            in_specs=[
                pl.BlockSpec((tm, H), lambda i, j: (i, 0)),  # normed activations
                pl.BlockSpec((H, tn), lambda i, j: (0, j)),  # weight tile (H, TN)
            ],
            out_specs=pl.BlockSpec((tm, tn), lambda i, j: (i, j)),
        ),
        compiler_params=pltpu.CompilerParams(
            # No cross-step state -> both axes shardable (v7x decode splits V).
            dimension_semantics=("parallel", "parallel"),
            vmem_limit_bytes=_VMEM_LIMIT,
        ),
        cost_estimate=cost,
    )(normed_bf16, w_t_bf16)


# --------------------------------------------------------------------------
# Wrapper (glue) code
# --------------------------------------------------------------------------
def prepare_lm_head_weight(concept_emb, *, tn=512):
    """Hoisted weight prep: transpose once to (H, Vp), cast bf16, pad V.

    Cache/call this once per weight update, not per forward call.
    """
    V, H = concept_emb.shape
    tn_eff = min(tn, _round_up(V, 128))
    Vp = _round_up(V, tn_eff)
    w_t = concept_emb.T.astype(jnp.bfloat16)          # (H, V)
    if Vp != V:
        w_t = jnp.pad(w_t, ((0, 0), (0, Vp - V)))
    return w_t


def sam_forward(input_concepts, params, *, prepared_w_t=None,
                tm=1024, tn=512, tm_ln=256):
    """JAX/Pallas equivalent of SAM.forward(input_concepts=...).

    Returns (loss, logits, hidden_states) matching the PyTorch signature.
    """
    concept_emb = params["concept_emb"]   # (V, H)  ConceptBank weight == lm_head weight (tied)
    pos_emb = params["pos_emb"]           # (P, H)  position_embeddings
    gamma = params["ln_gamma"].astype(jnp.float32)   # (1, H)
    beta = params["ln_beta"].astype(jnp.float32)     # (1, H)

    B, S = input_concepts.shape
    V, H = concept_emb.shape
    assert S <= pos_emb.shape[0], "sequence longer than max_position_embeddings"

    # Glue: embedding gather + position-embedding add, fused by XLA into one
    # (M, H) bf16 stream (no materialized (M, H) broadcast of pos_emb in HBM).
    ce = jnp.take(concept_emb, input_concepts, axis=0)             # (B, S, H)
    x = (ce + pos_emb[:S][None, :, :]).astype(jnp.bfloat16)        # (B, S, H) bf16

    M = B * S
    x2 = x.reshape(M, H)

    # --- M tiling (sublane multiple of 8) ---
    TM = min(tm, _round_up(M, 8))
    Mp = _round_up(M, TM)
    if Mp != M:
        x2 = jnp.pad(x2, ((0, Mp - M), (0, 0)))   # padded rows -> LN gives beta; sliced off

    TML = min(tm_ln, TM)
    if TM % TML != 0:
        TML = TM

    # --- V tiling (lane multiple of 128; 512 amortizes per-step overhead) ---
    TN = min(tn, _round_up(V, 128))
    if prepared_w_t is None:
        prepared_w_t = prepare_lm_head_weight(concept_emb, tn=tn)
    Hw, Vp = prepared_w_t.shape
    assert Hw == H and Vp >= V and Vp % TN == 0, "prepared weight / tile mismatch"

    # Kernel 1: LayerNorm (f32 hidden + bf16 normed copy).
    hid, normed = _sam_layernorm(x2, gamma, beta, tm=TML)

    # Kernel 2: tied lm_head matmul.
    logits = _sam_lm_head(normed, prepared_w_t, tm=TM, tn=TN)

    logits = logits[:M, :V].reshape(B, S, V)
    hidden_states = hid[:M].reshape(B, S, H)

    loss = None  # target_concepts not supplied in this demo
    return loss, logits, hidden_states


def init_params(key, vocab_size, hidden_dim, max_positions):
    """Deterministic synthetic parameter init (shapes follow SAM.__init__, scaled down)."""
    k1, k2 = jax.random.split(key)
    return {
        # ConceptBank concept_embeddings.weight == lm_head.weight (tied)
        "concept_emb": jax.random.normal(k1, (vocab_size, hidden_dim), jnp.float32) * 0.02,
        # nn.Embedding(max_position_embeddings, hidden_dim)
        "pos_emb": jax.random.normal(k2, (max_positions, hidden_dim), jnp.float32) * 0.02,
        # nn.LayerNorm(hidden_dim) default init
        "ln_gamma": jnp.ones((1, hidden_dim), jnp.float32),
        "ln_beta": jnp.zeros((1, hidden_dim), jnp.float32),
    }


if __name__ == "__main__":
    # Small shapes consistent with the module (scaled down):
    #   concept_memory_size (vocab) = 256, initial_hidden_dim = 128,
    #   max_position_embeddings = 32, batch = 2, seq = 8
    VOCAB, HIDDEN, MAXPOS = 256, 128, 32
    B, S = 2, 8

    key = jax.random.PRNGKey(0)
    kp, kx = jax.random.split(key)
    params = init_params(kp, VOCAB, HIDDEN, MAXPOS)
    input_concepts = jax.random.randint(kx, (B, S), 0, VOCAB, dtype=jnp.int32)

    # Hoisted weight prep (done once, reused across forward calls).
    w_t = prepare_lm_head_weight(params["concept_emb"], tn=512)
    w_t = jax.block_until_ready(w_t)

    loss, logits, hidden_states = sam_forward(input_concepts, params, prepared_w_t=w_t)
    jax.block_until_ready((logits, hidden_states))

    assert logits.shape == (B, S, VOCAB)
    assert hidden_states.shape == (B, S, HIDDEN)

    # Lightweight reference check (pure JAX) mirroring the kernel numerics
    # (bf16 activation stream, f32 LN stats, bf16 weights, f32 accumulate).
    ce = jnp.take(params["concept_emb"], input_concepts, axis=0)
    pe = params["pos_emb"][:S][None]
    x = (ce + pe).astype(jnp.bfloat16).astype(jnp.float32)
    mu = x.mean(-1, keepdims=True)
    var = ((x - mu) ** 2).mean(-1, keepdims=True)
    ref_hid = (x - mu) * jax.lax.rsqrt(var + 1e-5) * params["ln_gamma"][0] + params["ln_beta"][0]
    ref_logits = jnp.einsum(
        "bsh,vh->bsv",
        ref_hid.astype(jnp.bfloat16).astype(jnp.float32),
        params["concept_emb"].astype(jnp.bfloat16).astype(jnp.float32),
    )
    assert jnp.allclose(hidden_states, ref_hid, atol=1e-4, rtol=1e-4), "hidden mismatch"
    assert jnp.allclose(logits, ref_logits, atol=2e-2, rtol=2e-2), "logits mismatch"

    print("KERNEL_OK")
</pallas_src>

<mosaic_0001>
module attributes {stable_mosaic.version = 11 : i64} {
  func.func @layernorm_kernel(%arg0: i32, %arg1: memref<16x128xbf16, #tpu.memory_space<vmem>>, %arg2: memref<1x128xf32, #tpu.memory_space<vmem>>, %arg3: memref<1x128xf32, #tpu.memory_space<vmem>>, %arg4: memref<16x128xf32, #tpu.memory_space<vmem>>, %arg5: memref<16x128xbf16, #tpu.memory_space<vmem>>) attributes {dimension_semantics = [#tpu.dimension_semantics<parallel>], iteration_bounds = array<i64: 1>, scalar_prefetch = 0 : i64, scratch_operands = 0 : i64, tpu.core_type = #tpu.core_type<tc>, window_params = [{transform_indices = @transform_0, window_bounds = array<i64: 16, 128>}, {pipeline_mode = #tpu.pipeline_mode<synchronous>, transform_indices = @transform_1, window_bounds = array<i64: 1, 128>}, {pipeline_mode = #tpu.pipeline_mode<synchronous>, transform_indices = @transform_2, window_bounds = array<i64: 1, 128>}, {transform_indices = @transform_3, window_bounds = array<i64: 16, 128>}, {transform_indices = @transform_4, window_bounds = array<i64: 16, 128>}]} {
    %c0 = arith.constant 0 : index
    %c0_0 = arith.constant 0 : index
    %0 = vector.load %arg1[%c0, %c0_0] : memref<16x128xbf16, #tpu.memory_space<vmem>>, vector<16x128xbf16>
    %1 = arith.extf %0 : vector<16x128xbf16> to vector<16x128xf32>
    %cst = arith.constant dense<0.000000e+00> : vector<16xf32>
    %2 = vector.multi_reduction <add>, %1, %cst [1] : vector<16x128xf32> to vector<16xf32>
    %3 = vector.shape_cast %2 : vector<16xf32> to vector<16x1xf32>
    %cst_1 = arith.constant 1.280000e+02 : f32
    %4 = vector.broadcast %cst_1 : f32 to vector<16x1xf32>
    %5 = arith.divf %3, %4 : vector<16x1xf32>
    %6 = vector.broadcast %5 : vector<16x1xf32> to vector<16x128xf32>
    %7 = arith.subf %1, %6 : vector<16x128xf32>
    %8 = arith.mulf %7, %7 : vector<16x128xf32>
    %cst_2 = arith.constant dense<0.000000e+00> : vector<16xf32>
    %9 = vector.multi_reduction <add>, %8, %cst_2 [1] : vector<16x128xf32> to vector<16xf32>
    %10 = vector.shape_cast %9 : vector<16xf32> to vector<16x1xf32>
    %cst_3 = arith.constant 1.280000e+02 : f32
    %11 = vector.broadcast %cst_3 : f32 to vector<16x1xf32>
    %12 = arith.divf %10, %11 : vector<16x1xf32>
    %cst_4 = arith.constant 9.99999974E-6 : f32
    %13 = vector.broadcast %cst_4 : f32 to vector<16x1xf32>
    %14 = arith.addf %12, %13 : vector<16x1xf32>
    %15 = math.rsqrt %14 : vector<16x1xf32>
    %16 = vector.broadcast %15 : vector<16x1xf32> to vector<16x128xf32>
    %17 = arith.mulf %7, %16 : vector<16x128xf32>
    %c0_5 = arith.constant 0 : index
    %c0_6 = arith.constant 0 : index
    %18 = vector.load %arg2[%c0_5, %c0_6] : memref<1x128xf32, #tpu.memory_space<vmem>>, vector<1x128xf32>
    %19 = vector.broadcast %18 : vector<1x128xf32> to vector<16x128xf32>
    %20 = arith.mulf %17, %19 : vector<16x128xf32>
    %c0_7 = arith.constant 0 : index
    %c0_8 = arith.constant 0 : index
    %21 = vector.load %arg3[%c0_7, %c0_8] : memref<1x128xf32, #tpu.memory_space<vmem>>, vector<1x128xf32>
    %22 = vector.broadcast %21 : vector<1x128xf32> to vector<16x128xf32>
    %23 = arith.addf %20, %22 : vector<16x128xf32>
    %c0_9 = arith.constant 0 : index
    %c0_10 = arith.constant 0 : index
    %24 = vector.load %arg4[%c0_9, %c0_10] : memref<16x128xf32, #tpu.memory_space<vmem>>, vector<16x128xf32>
    tpu.vector_store %arg4[%c0_9, %c0_10], %23 {strides = array<i32>} : memref<16x128xf32, #tpu.memory_space<vmem>>, vector<16x128xf32>,
    %25 = arith.truncf %23 : vector<16x128xf32> to vector<16x128xbf16>
    %c0_11 = arith.constant 0 : index
    %c0_12 = arith.constant 0 : index
    %26 = vector.load %arg5[%c0_11, %c0_12] : memref<16x128xbf16, #tpu.memory_space<vmem>>, vector<16x128xbf16>
    tpu.vector_store %arg5[%c0_11, %c0_12], %25 {strides = array<i32>} : memref<16x128xbf16, #tpu.memory_space<vmem>>, vector<16x128xbf16>,
    return
  }
  func.func @transform_0(%arg0: i32) -> (i32, i32) {
    %c0_i32 = arith.constant 0 : i32
    %c0_i32_0 = arith.constant 0 : i32
    return %arg0, %c0_i32 : i32, i32
  }
  func.func @transform_1(%arg0: i32) -> (i32, i32) {
    %c0_i32 = arith.constant 0 : i32
    %c0_i32_0 = arith.constant 0 : i32
    %c0_i32_1 = arith.constant 0 : i32
    return %c0_i32, %c0_i32_0 : i32, i32
  }
  func.func @transform_2(%arg0: i32) -> (i32, i32) {
    %c0_i32 = arith.constant 0 : i32
    %c0_i32_0 = arith.constant 0 : i32
    %c0_i32_1 = arith.constant 0 : i32
    return %c0_i32, %c0_i32_0 : i32, i32
  }
  func.func @transform_3(%arg0: i32) -> (i32, i32) {
    %c0_i32 = arith.constant 0 : i32
    %c0_i32_0 = arith.constant 0 : i32
    return %arg0, %c0_i32 : i32, i32
  }
  func.func @transform_4(%arg0: i32) -> (i32, i32) {
    %c0_i32 = arith.constant 0 : i32
    %c0_i32_0 = arith.constant 0 : i32
    return %arg0, %c0_i32 : i32, i32
  }
}

</mosaic_0001>

<llo_original>
// kernel: _sam_layernorm.1
$region0: #{_sam_layernorm.1}
  #allocation0 [shape = 'u32[]', space=smem, size = 0x4, offset = 0x4, fixed_abs, tag = 'smem constant byte address 0x4 - core index']
  #allocation1 [shape = 'u32[144,128]{1,0:T(1,128)}', space=vmem, size = 0x12000, scoped, tag = 'internal scratch']
  %s0 = inlined_call_operand.hbm [shape: bf16[16,128], index: 0, kind: input, shape index: {}]
  %s1 = inlined_call_operand.vmem [shape: f32[1,128], index: 1, kind: input, shape index: {}]
  %s2 = inlined_call_operand.vmem [shape: f32[1,128], index: 2, kind: input, shape index: {}]
  %s3 = inlined_call_operand.hbm [shape: f32[16,128], index: 3, kind: output, shape index: {0}]
  %s4 = inlined_call_operand.hbm [shape: bf16[16,128], index: 4, kind: output, shape index: {1}]
  %5 = xla_tuple %s3, %s4
  %s6 = sld [smem:[#allocation0]]
  $region34: #{_sam_layernorm.1} parent=0
    _
  %s8 = ssub.s32 1, %s6
  %s9 = scalar_select 0, %s8, %s6
  $region1: #{_sam_layernorm.1} parent=0
    #allocation2 [shape = 'u8[4096]{0}', space=vmem, size = 0x1000, scoped, tag = 'input window, operand 0, single buffered']
    #allocation3 [shape = 's32[1]{0}', space=sflag, size = 0x4, scoped, tag = 'scoped memory for _sam_layernorm.1']
    #allocation4 [shape = 's32[1]{0}', space=sflag, size = 0x4, scoped, tag = 'scoped memory for _sam_layernorm.1']
    #allocation5 [shape = 'u8[8192]{0}', space=vmem, size = 0x2000, scoped, tag = 'output window, operand 0, single buffered']
    #allocation6 [shape = 'u8[4096]{0}', space=vmem, size = 0x1000, scoped, tag = 'output window, operand 1, single buffered']
    #allocation7 [shape = 's32[1]{0}', space=sflag, size = 0x4, scoped, tag = 'scoped memory for _sam_layernorm.1']
    %10 = vsyncpa [#allocation3], 0
    %11 = vsyncpa [#allocation4], 0
    %12 = vsyncpa [#allocation7], 0
    // Predicated region
    $region2: #{_sam_layernorm.1} parent=1 // pred_check
      _
    $region3: #{_sam_layernorm.1} parent=1 // pred_check_branch
      %14 = sbr.rel (0) target = $region5
    $region4: #{_sam_layernorm.1} parent=1 // pred_region
      %s16 = ssub.s32 128, 128
      %17 = vsyncadd [#allocation3], %s16
      %s18 = sshll.u32 [#allocation2], 4
      %s19 = int_to_ptr.vmem [resolvable:$true] %s18
      %24 = dma.hbm_to_vmem [thread:$0]  %s0, 128, %s19, [#allocation3], 64, 64, 4
    $region5: #{_sam_layernorm.1} parent=1 // pred_fallthru
      _
    // Predicated region
    $region6: #{_sam_layernorm.1} parent=1 // pred_check
      _
    $region7: #{_sam_layernorm.1} parent=1 // pred_check_branch
      %26 = sbr.rel (0) target = $region9
    $region8: #{_sam_layernorm.1} parent=1 // pred_region
      _
    $region9: #{_sam_layernorm.1} parent=1 // pred_fallthru
      _
    // Predicated region
    $region10: #{_sam_layernorm.1} parent=1 // pred_check
      _
    $region11: #{_sam_layernorm.1} parent=1 // pred_check_branch
      %28 = sbr.rel (0) target = $region13
    $region12: #{_sam_layernorm.1} parent=1 // pred_region
      _
    $region13: #{_sam_layernorm.1} parent=1 // pred_fallthru
      _
    // Predicated region
    $region14: #{_sam_layernorm.1} parent=1 // pred_check
      _
    $region15: #{_sam_layernorm.1} parent=1 // pred_check_branch
      %30 = sbr.rel (0) target = $region17
    $region16: #{_sam_layernorm.1} parent=1 // pred_region
      %31 = dma.done [#allocation3], 128
    $region17: #{_sam_layernorm.1} parent=1 // pred_fallthru
      _
    %v32 = vld [vmem:[#allocation2] sm:$0xf]
    %v33 = vld [vmem:[#allocation2 + $0x4] sm:$0xf]
    %v34 = vunpack.c.l.bf16 %v32
    %v35 = vunpack.c.l.bf16 %v33
    %36 = vadd.xlane.f32.xlu0 %v34
    %v37 = vpop.xlane.xlu0 %36
    %38 = vadd.xlane.f32.xlu0 %v35
    %v39 = vpop.xlane.xlu0 %38
    %v40 = vrcp.pop 128.0
    %v41 = vmul.f32 %v37, %v40
    %v42 = vmul.f32 %v39, %v40
    %v43 = vsub.f32 %v34, %v41
    %v44 = vsub.f32 %v35, %v42
    %v45 = vmul.f32 %v43, %v43
    %v46 = vmul.f32 %v44, %v44
    %47 = vadd.xlane.f32.xlu0 %v45
    %v48 = vpop.xlane.xlu0 %47
    %49 = vadd.xlane.f32.xlu0 %v46
    %v50 = vpop.xlane.xlu0 %49
    %v51 = vmul.f32 %v48, %v40
    %v52 = vmul.f32 %v50, %v40
    %v53 = vadd.f32 %v51, 1e-05
    %v54 = vadd.f32 %v52, 1e-05
    %v55 = vrsqrt.pop %v53
    %v56 = vrsqrt.pop %v54
    %v57 = vmul.f32 %v43, %v55
    %v58 = vmul.f32 %v44, %v56
    %v59 = vld [vmem:[%s1] sm:$0x1]
    %v61 = vlaneseq
    %v62 = vshrl.u32 %v61, 7
    %v63 = vsub.s32 0, %v62
    %v64 = vrot.slane %v59, %v63
    %v66 = vmul.f32 %v57, %v64
    %v67 = vmul.f32 %v58, %v64
    %v68 = vld [vmem:[%s2] sm:$0x1]
    %v70 = vlaneseq
    %v71 = vshrl.u32 %v70, 7
    %v72 = vsub.s32 0, %v71
    %v73 = vrot.slane %v68, %v72
    %v75 = vadd.f32 %v66, %v73
    %v76 = vadd.f32 %v67, %v73
    %77 = vst [vmem:[#allocation5] sm:$0xff] %v75
    %78 = vst [vmem:[#allocation5 + $0x8] sm:$0xff] %v76
    %v79 = vpack.c.bf16 %v76, %v75
    %v81 = vunpack.c.l.b16 %v79
    %v82 = vunpack.c.h.b16 %v79
    %v83 = vpack.c.b16 %v81, %v81
    %v84 = vpack.c.b16 %v82, %v82
    %87 = vst [vmem:[#allocation6] sm:$0xf] %v83
    %88 = vst [vmem:[#allocation6 + $0x4] sm:$0xf] %v84
    // Predicated region
    $region18: #{_sam_layernorm.1} parent=1 // pred_check
      _
    $region19: #{_sam_layernorm.1} parent=1 // pred_check_branch
      %90 = sbr.rel (0) target = $region21
    $region20: #{_sam_layernorm.1} parent=1 // pred_region
      %s92 = ssub.s32 256, 256
      %93 = vsyncadd [#allocation4], %s92
      %s94 = sshll.u32 [#allocation5], 4
      %s95 = int_to_ptr.vmem [resolvable:$true] %s94
      %100 = dma.vmem_to_hbm [thread:$0]  %s95, 256, %s3, [#allocation4], 128, 128, 8
    $region21: #{_sam_layernorm.1} parent=1 // pred_fallthru
      _
    // Predicated region
    $region22: #{_sam_layernorm.1} parent=1 // pred_check
      _
    $region23: #{_sam_layernorm.1} parent=1 // pred_check_branch
      %102 = sbr.rel (0) target = $region25
    $region24: #{_sam_layernorm.1} parent=1 // pred_region
      %s104 = ssub.s32 128, 128
      %105 = vsyncadd [#allocation7], %s104
      %s106 = sshll.u32 [#allocation6], 4
      %s107 = int_to_ptr.vmem [resolvable:$true] %s106
      %112 = dma.vmem_to_hbm [thread:$0]  %s107, 128, %s4, [#allocation7], 64, 64, 4
    $region25: #{_sam_layernorm.1} parent=1 // pred_fallthru
      _
    // Predicated region
    $region26: #{_sam_layernorm.1} parent=1 // pred_check
      _
    $region27: #{_sam_layernorm.1} parent=1 // pred_check_branch
      %114 = sbr.rel (0) target = $region29
    $region28: #{_sam_layernorm.1} parent=1 // pred_region
      %115 = dma.done [#allocation4], 256
    $region29: #{_sam_layernorm.1} parent=1 // pred_fallthru
      _
    // Predicated region
    $region30: #{_sam_layernorm.1} parent=1 // pred_check
      _
    $region31: #{_sam_layernorm.1} parent=1 // pred_check_branch
      %117 = sbr.rel (0) target = $region33
    $region32: #{_sam_layernorm.1} parent=1 // pred_region
      %118 = dma.done [#allocation7], 128
    $region33: #{_sam_layernorm.1} parent=1 // pred_fallthru
      _
    %119 = vsyncpa [#allocation3], 1
    %120 = vsyncpa [#allocation4], 1
    %121 = vsyncpa [#allocation7], 1

</llo_original>
